<compile_context>
chip_gen: v7x
topology: tpu7x:2x2x1
jax: 0.10.0
libtpu: 0.0.40
codegen_flags: <defaults>
</compile_context>

<pallas_src>
import functools

import jax
import jax.numpy as jnp
from jax import lax
from jax.experimental import pallas as pl
from jax.experimental.pallas import tpu as pltpu


# ---------------------------------------------------------------------------
# Small helpers
# ---------------------------------------------------------------------------
def _sublane_align(dtype) -> int:
    """Sublane packing for the dtype: 8 for f32, 16 for bf16, 32 for int8."""
    return max(8, 32 // jnp.dtype(dtype).itemsize)


def _pick_tile(n: int, cap: int, align: int) -> int:
    """Largest tile <= min(n, cap) that divides n and is a multiple of `align`.
    Falls back to the full extent (always a legal block shape)."""
    cap = min(cap, n)
    if n <= align:
        return n
    t = (cap // align) * align
    while t >= align:
        if n % t == 0:
            return t
        t -= align
    return n


def _pick_token_tile(m: int, cap: int, align: int) -> int:
    """Token tile; prefer >=2 grid steps so v7x can shard across its 2 TCs."""
    tm = _pick_tile(m, cap, align)
    if m // tm < 2:
        tm2 = _pick_tile(m, max(align, tm // 2), align)
        if tm2 < tm:
            tm = tm2
    return tm


def _vmem_budget_bytes() -> int:
    """Generation-aware VMEM budget (leave headroom below physical capacity)."""
    cap = 128 * 1024 * 1024
    try:
        cap = int(pltpu.get_tpu_info().vmem_capacity_bytes)
    except Exception:
        pass
    return int(cap * 3 // 4)  # ~96 MiB on v5e/v6e, ~48 MiB on v7x


def prepare_params(params, *, compute_dtype=None):
    """One-time weight preparation (layout only — no math change):
       * wg, wc (PyTorch [out, in]) -> wgc = [in, 2*out] (concat of transposes)
       * w1, w3 -> w13 = [in, 2*hidden];  w2 -> w2t = [hidden, in]
       * RMSNorm weights reshaped to (1, d) for lane-broadcast inside kernels.
    """
    d = params["ln_w"].shape[0]
    wdt = compute_dtype or params["wg"].dtype   # keep f32 to match the module exactly;
    #                                           # pass jnp.bfloat16 to run the MXU in bf16.
    prep = {
        "ln_w": params["ln_w"].reshape(1, d),
        "wgc": jnp.concatenate([params["wg"].T, params["wc"].T], axis=1).astype(wdt),
    }
    if "w1" in params:
        prep["ffn_w"] = params["ffn_w"].reshape(1, d)
        prep["w13"] = jnp.concatenate([params["w1"].T, params["w3"].T], axis=1).astype(wdt)
        prep["w2t"] = params["w2"].T.astype(wdt)
    return prep


# ---------------------------------------------------------------------------
# Fully fused block kernel (hx_prev given, weights resident in VMEM).
# ---------------------------------------------------------------------------
def _fused_block_kernel(inp_ref, hx_ref, lnw_ref, wgc_ref, ffw_ref, w13_ref, w2t_ref,
                        out_ref, hxn_ref, *, eps, hdim, fdim):
    x = inp_ref[...].astype(jnp.float32)
    # RMSNorm (layer_norm)
    ms = jnp.mean(x * x, axis=-1, keepdims=True)
    nx = (x * lax.rsqrt(ms + eps)) * lnw_ref[...].astype(jnp.float32)
    # One [tm, d] . [d, 2h] matmul for gate + candidate (full MXU N-fill).
    gc = jnp.dot(nx.astype(wgc_ref.dtype), wgc_ref[...],
                 preferred_element_type=jnp.float32)
    beta = jax.nn.sigmoid(gc[:, :hdim])
    hhat = gc[:, hdim:]
    hx_next = (1.0 - beta) * hx_ref[...].astype(jnp.float32) + beta * hhat
    hxn_ref[...] = hx_next.astype(hxn_ref.dtype)
    # Residual + ffn RMSNorm
    mid = x + hx_next
    ms2 = jnp.mean(mid * mid, axis=-1, keepdims=True)
    xn = (mid * lax.rsqrt(ms2 + eps)) * ffw_ref[...].astype(jnp.float32)
    # One [tm, d] . [d, 2f] matmul for w1 + w3.
    h13 = jnp.dot(xn.astype(w13_ref.dtype), w13_ref[...],
                  preferred_element_type=jnp.float32)
    h1 = h13[:, :fdim]
    h3 = h13[:, fdim:]
    hact = (h1 * jax.nn.sigmoid(h1)) * h3           # SiLU(h1) * h3 in f32
    ff = jnp.dot(hact.astype(w2t_ref.dtype), w2t_ref[...],
                 preferred_element_type=jnp.float32)
    out_ref[...] = (mid + ff).astype(out_ref.dtype)


def fused_block(x2, hx2, prep, *, eps, budget, tm_cap=512):
    m, d = x2.shape
    hdim = prep["wgc"].shape[1] // 2
    fdim = prep["w13"].shape[1] // 2
    tm = _pick_token_tile(m, tm_cap, _sublane_align(x2.dtype))
    wdt = prep["wgc"].dtype
    wi = jnp.dtype(wdt).itemsize
    xi = jnp.dtype(x2.dtype).itemsize
    cost = pl.CostEstimate(
        flops=4 * m * d * hdim + 6 * m * d * fdim,
        transcendentals=m * (hdim + fdim) + 2 * m,
        bytes_accessed=(2 * m * (d + hdim)) * xi
        + (prep["wgc"].size + prep["w13"].size + prep["w2t"].size) * wi
        + 2 * d * 4,
    )
    out, hxn = pl.pallas_call(
        functools.partial(_fused_block_kernel, eps=eps, hdim=hdim, fdim=fdim),
        out_shape=(jax.ShapeDtypeStruct((m, d), x2.dtype),
                   jax.ShapeDtypeStruct((m, hdim), x2.dtype)),
        grid=(m // tm,),
        in_specs=[
            pl.BlockSpec((tm, d), lambda i: (i, 0)),          # inp token tile
            pl.BlockSpec((tm, hdim), lambda i: (i, 0)),       # hx_prev token tile
            pl.BlockSpec((1, d), lambda i: (0, 0)),           # layer_norm weight
            pl.BlockSpec((d, 2 * hdim), lambda i: (0, 0)),    # [wg^T | wc^T]
            pl.BlockSpec((1, d), lambda i: (0, 0)),           # ffn_norm weight
            pl.BlockSpec((d, 2 * fdim), lambda i: (0, 0)),    # [w1^T | w3^T]
            pl.BlockSpec((fdim, d), lambda i: (0, 0)),        # w2^T
        ],
        out_specs=(pl.BlockSpec((tm, d), lambda i: (i, 0)),
                   pl.BlockSpec((tm, hdim), lambda i: (i, 0))),
        compiler_params=pltpu.CompilerParams(
            dimension_semantics=("parallel",), vmem_limit_bytes=budget),
        cost_estimate=cost,
    )(x2, hx2, prep["ln_w"], prep["wgc"], prep["ffn_w"], prep["w13"], prep["w2t"])
    return out, hxn


def _fused_fits(m, d, hdim, fdim, wdt, xdt, budget, tm_cap=512):
    wi = jnp.dtype(wdt).itemsize
    xi = jnp.dtype(xdt).itemsize
    tm = min(tm_cap, m)
    wbytes = (d * 2 * hdim + d * 2 * fdim + fdim * d + 2 * d) * wi
    iobytes = 2 * 2 * tm * (d + hdim) * xi            # double-buffered in/out tiles
    tbytes = tm * (2 * hdim + 2 * fdim + 4 * d) * 4   # f32 intermediates
    return wbytes + iobytes + tbytes <= budget


# ---------------------------------------------------------------------------
# Fallback kernel 1a: RMSNorm + gate/candidate projections -> a, beta*hhat
# (needed for the hx_prev=None scan path).
# ---------------------------------------------------------------------------
def _gates_kernel(inp_ref, lnw_ref, wgc_ref, a_ref, bx_ref, *, eps, hdim):
    x = inp_ref[...].astype(jnp.float32)
    ms = jnp.mean(x * x, axis=-1, keepdims=True)
    nx = (x * lax.rsqrt(ms + eps)) * lnw_ref[...].astype(jnp.float32)
    gc = jnp.dot(nx.astype(wgc_ref.dtype), wgc_ref[...],
                 preferred_element_type=jnp.float32)
    beta = jax.nn.sigmoid(gc[:, :hdim])
    hhat = gc[:, hdim:]
    a_ref[...] = (1.0 - beta).astype(a_ref.dtype)
    bx_ref[...] = (beta * hhat).astype(bx_ref.dtype)


# Fallback kernel 1b: same, but fused with the one-step recurrence -> hx_next.
def _gates_rec_kernel(inp_ref, hx_ref, lnw_ref, wgc_ref, hxn_ref, *, eps, hdim):
    x = inp_ref[...].astype(jnp.float32)
    ms = jnp.mean(x * x, axis=-1, keepdims=True)
    nx = (x * lax.rsqrt(ms + eps)) * lnw_ref[...].astype(jnp.float32)
    gc = jnp.dot(nx.astype(wgc_ref.dtype), wgc_ref[...],
                 preferred_element_type=jnp.float32)
    beta = jax.nn.sigmoid(gc[:, :hdim])
    hhat = gc[:, hdim:]
    hx_next = (1.0 - beta) * hx_ref[...].astype(jnp.float32) + beta * hhat
    hxn_ref[...] = hx_next.astype(hxn_ref.dtype)


def _gates_call(kernel, extra_inputs, extra_specs, out_shapes, out_specs,
                x2, prep, *, eps, budget, tm_cap=512):
    m, d = x2.shape
    hdim = prep["wgc"].shape[1] // 2
    tm = _pick_token_tile(m, tm_cap, _sublane_align(x2.dtype))
    wi = jnp.dtype(prep["wgc"].dtype).itemsize
    xi = jnp.dtype(x2.dtype).itemsize
    cost = pl.CostEstimate(
        flops=4 * m * d * hdim,
        transcendentals=m * hdim + m,
        bytes_accessed=m * d * xi + 3 * m * hdim * 4 + prep["wgc"].size * wi + d * 4,
    )
    return pl.pallas_call(
        functools.partial(kernel, eps=eps, hdim=hdim),
        out_shape=out_shapes(m, hdim),
        grid=(m // tm,),
        in_specs=[pl.BlockSpec((tm, d), lambda i: (i, 0))]
        + extra_specs(tm, hdim)
        + [pl.BlockSpec((1, d), lambda i: (0, 0)),
           pl.BlockSpec((d, 2 * hdim), lambda i: (0, 0))],
        out_specs=out_specs(tm, hdim),
        compiler_params=pltpu.CompilerParams(
            dimension_semantics=("parallel",), vmem_limit_bytes=budget),
        cost_estimate=cost,
    )(x2, *extra_inputs, prep["ln_w"], prep["wgc"])


def mingru_gates(x2, prep, *, eps, budget):
    # a / beta*hhat are emitted in f32 so the sequence scan accumulates in f32.
    return _gates_call(
        _gates_kernel, (), lambda tm, h: [],
        lambda m, h: (jax.ShapeDtypeStruct((m, h), jnp.float32),
                      jax.ShapeDtypeStruct((m, h), jnp.float32)),
        lambda tm, h: (pl.BlockSpec((tm, h), lambda i: (i, 0)),
                       pl.BlockSpec((tm, h), lambda i: (i, 0))),
        x2, prep, eps=eps, budget=budget)


def mingru_gates_rec(x2, hx2, prep, *, eps, budget):
    return _gates_call(
        _gates_rec_kernel, (hx2,),
        lambda tm, h: [pl.BlockSpec((tm, h), lambda i: (i, 0))],
        lambda m, h: jax.ShapeDtypeStruct((m, h), x2.dtype),
        lambda tm, h: pl.BlockSpec((tm, h), lambda i: (i, 0)),
        x2, prep, eps=eps, budget=budget)


# ---------------------------------------------------------------------------
# Fallback kernel 2: mid = inp + hx_next, RMSNorm, SwiGLU FFN, residual.
# Tiled over (tokens, ffn hidden); reduction axis last with f32 accumulator.
# ---------------------------------------------------------------------------
def _ffn_kernel(x_ref, h_ref, ffw_ref, w1_ref, w3_ref, w2_ref, o_ref,
                xn_ref, acc_ref, *, eps):
    k = pl.program_id(1)

    @pl.when(k == 0)
    def _():
        mid = x_ref[...].astype(jnp.float32) + h_ref[...].astype(jnp.float32)
        ms = jnp.mean(mid * mid, axis=-1, keepdims=True)
        xn_ref[...] = ((mid * lax.rsqrt(ms + eps))
                       * ffw_ref[...].astype(jnp.float32)).astype(xn_ref.dtype)
        acc_ref[...] = jnp.zeros_like(acc_ref)

    xn = xn_ref[...]                                   # already in matmul dtype
    h1 = jnp.dot(xn, w1_ref[...], preferred_element_type=jnp.float32)
    h3 = jnp.dot(xn, w3_ref[...], preferred_element_type=jnp.float32)
    hact = (h1 * jax.nn.sigmoid(h1)) * h3
    acc_ref[...] += jnp.dot(hact.astype(w2_ref.dtype), w2_ref[...],
                            preferred_element_type=jnp.float32)

    @pl.when(k == pl.num_programs(1) - 1)
    def _():
        mid = x_ref[...].astype(jnp.float32) + h_ref[...].astype(jnp.float32)
        o_ref[...] = (mid + acc_ref[...]).astype(o_ref.dtype)


def ffn_residual(x2, hxn, prep, *, eps, budget, tm_cap=512):
    m, d = x2.shape
    fdim = prep["w13"].shape[1] // 2
    wdt = prep["w13"].dtype
    wi = jnp.dtype(wdt).itemsize
    xi = jnp.dtype(x2.dtype).itemsize
    # weight tile over the ffn hidden dim, sized so 3 double-buffered (d,th)
    # weight tiles stay well inside the generation-aware VMEM budget.
    th_cap = max(128, (budget // 2) // (6 * d * wi) // 128 * 128)
    th = _pick_tile(fdim, th_cap, 128)
    tm = _pick_token_tile(m, tm_cap, _sublane_align(x2.dtype))
    nkb = fdim // th                                   # blocks per half of w13
    cost = pl.CostEstimate(
        flops=6 * m * d * fdim,
        transcendentals=m * fdim,
        bytes_accessed=(m // tm) * 3 * d * fdim * wi + 3 * m * d * xi + d * 4,
    )
    return pl.pallas_call(
        functools.partial(_ffn_kernel, eps=eps),
        out_shape=jax.ShapeDtypeStruct((m, d), x2.dtype),
        grid=(m // tm, fdim // th),
        in_specs=[
            pl.BlockSpec((tm, d), lambda i, k: (i, 0)),            # inp tile
            pl.BlockSpec((tm, d), lambda i, k: (i, 0)),            # hx_next tile
            pl.BlockSpec((1, d), lambda i, k: (0, 0)),             # ffn_norm weight
            pl.BlockSpec((d, th), lambda i, k: (0, k)),            # w1^T columns of w13
            pl.BlockSpec((d, th), lambda i, k: (0, nkb + k)),      # w3^T columns of w13
            pl.BlockSpec((th, d), lambda i, k: (k, 0)),            # w2^T rows
        ],
        out_specs=pl.BlockSpec((tm, d), lambda i, k: (i, 0)),
        scratch_shapes=[pltpu.VMEM((tm, d), wdt),                  # normed mid (matmul dtype)
                        pltpu.VMEM((tm, d), jnp.float32)],         # f32 accumulator
        compiler_params=pltpu.CompilerParams(
            dimension_semantics=("parallel", "arbitrary"),
            vmem_limit_bytes=budget),
        cost_estimate=cost,
    )(x2, hxn, prep["ffn_w"], prep["w13"], prep["w13"], prep["w2t"])


# ---------------------------------------------------------------------------
# Full MinGRUBlock forward.
# ---------------------------------------------------------------------------
def min_gru_block(inp, prep, hx_prev=None, *, has_ffn=True, eps=1e-6, use_fused=None):
    b, l, d = inp.shape
    m = b * l
    x2 = inp.reshape(m, d)
    hdim = prep["wgc"].shape[1] // 2
    budget = _vmem_budget_bytes()

    if hx_prev is not None:
        hx2 = hx_prev.reshape(m, hdim)
        fused_ok = has_ffn and _fused_fits(m, d, hdim, prep["w13"].shape[1] // 2,
                                           prep["wgc"].dtype, x2.dtype, budget)
        if use_fused is not None:
            fused_ok = use_fused and has_ffn
        if fused_ok:
            out2, hxn2 = fused_block(x2, hx2, prep, eps=eps, budget=budget)
            return out2.reshape(b, l, d), hxn2.reshape(b, l, hdim)
        hxn2 = mingru_gates_rec(x2, hx2, prep, eps=eps, budget=budget)
    else:
        # TODO(synk): pscan() source not provided; assume the standard minGRU
        # first-order recurrence h_t = a_t*h_{t-1} + x_t with h_0 = 0 (f32
        # associative scan between the two kernels).
        a, bx = mingru_gates(x2, prep, eps=eps, budget=budget)
        aa = a.reshape(b, l, hdim)
        xx = bx.reshape(b, l, hdim)

        def combine(c1, c2):
            a1, x1 = c1
            a2, x2_ = c2
            return a1 * a2, a2 * x1 + x2_

        _, hseq = lax.associative_scan(combine, (aa, xx), axis=1)
        hxn2 = hseq.reshape(m, hdim).astype(inp.dtype)

    if has_ffn:
        out2 = ffn_residual(x2, hxn2, prep, eps=eps, budget=budget)
    else:
        out2 = (x2 + hxn2).astype(inp.dtype)
    return out2.reshape(b, l, d), hxn2.reshape(b, l, hdim)


# ---------------------------------------------------------------------------
# Pure-JAX reference (mirrors the PyTorch module in eval mode).
# ---------------------------------------------------------------------------
def _ref_rmsnorm(x, w, eps=1e-6):
    xf = x.astype(jnp.float32)
    n = xf * lax.rsqrt(jnp.mean(xf * xf, axis=-1, keepdims=True) + eps)
    return n.astype(x.dtype) * w


def _ref_block(inp, params, hx_prev=None, has_ffn=True, eps=1e-6):
    nx = _ref_rmsnorm(inp, params["ln_w"], eps)
    beta = jax.nn.sigmoid(nx @ params["wg"].T)
    hhat = nx @ params["wc"].T
    a = 1.0 - beta
    x = beta * hhat
    if hx_prev is not None:
        hx_next = a * hx_prev + x
    else:
        def step(h, axt):
            a_t, x_t = axt
            h_new = a_t * h + x_t
            return h_new, h_new
        _, hseq = lax.scan(step, jnp.zeros_like(x[:, 0]),
                           (jnp.swapaxes(a, 0, 1), jnp.swapaxes(x, 0, 1)))
        hx_next = jnp.swapaxes(hseq, 0, 1)
    mid = inp + hx_next
    if has_ffn:
        nm = _ref_rmsnorm(mid, params["ffn_w"], eps)
        ff = (jax.nn.silu(nm @ params["w1"].T) * (nm @ params["w3"].T)) @ params["w2"].T
        out = mid + ff
    else:
        out = mid
    return out, hx_next


if __name__ == "__main__":
    # MinGRUBlock(dim=128): hidden_size = dim, FFN hidden = hidden_size
    # (multiple_of=1), dropout=0 (identity at eval).  dim=128 keeps every
    # last dim lane-aligned (no masked stores / padded vregs).
    dim = 128
    hidden = dim
    ffn_hidden = hidden
    batch, seq = 2, 8

    key = jax.random.PRNGKey(0)
    ks = jax.random.split(key, 8)
    inp = jax.random.normal(ks[0], (batch, seq, dim), dtype=jnp.float32)
    hx_prev = jax.random.normal(ks[1], (batch, seq, hidden), dtype=jnp.float32)
    params = dict(
        ln_w=jnp.ones((dim,), jnp.float32) + 0.1 * jax.random.normal(ks[2], (dim,)),
        wg=0.05 * jax.random.normal(ks[3], (hidden, dim), dtype=jnp.float32),
        wc=0.05 * jax.random.normal(ks[4], (hidden, dim), dtype=jnp.float32),
        ffn_w=jnp.ones((dim,), jnp.float32) + 0.1 * jax.random.normal(ks[5], (dim,)),
        w1=0.05 * jax.random.normal(ks[6], (ffn_hidden, dim), dtype=jnp.float32),
        w2=0.05 * jax.random.normal(ks[7], (dim, ffn_hidden), dtype=jnp.float32),
        w3=0.05 * jax.random.normal(jax.random.PRNGKey(123), (ffn_hidden, dim),
                                    dtype=jnp.float32),
    )
    prep = prepare_params(params)   # one-time transpose/concat of weights

    # Path 1: step with provided hx_prev -> fully fused single kernel.
    out, hx_next = min_gru_block(inp, prep, hx_prev=hx_prev)
    jax.block_until_ready((out, hx_next))
    ref_out, ref_hx = _ref_block(inp, params, hx_prev=hx_prev)
    assert out.shape == inp.shape and hx_next.shape == (batch, seq, hidden)
    assert jnp.allclose(hx_next, ref_hx, atol=2e-3, rtol=2e-3)
    assert jnp.allclose(out, ref_out, atol=2e-3, rtol=2e-3)

    # Path 2: hx_prev given, forced two-kernel fallback (large-dim code path).
    out_f, hx_f = min_gru_block(inp, prep, hx_prev=hx_prev, use_fused=False)
    jax.block_until_ready((out_f, hx_f))
    assert jnp.allclose(hx_f, ref_hx, atol=2e-3, rtol=2e-3)
    assert jnp.allclose(out_f, ref_out, atol=2e-3, rtol=2e-3)

    # Path 3: no hx_prev -> gates kernel + sequence scan + fused FFN kernel.
    out2, hx2 = min_gru_block(inp, prep, hx_prev=None)
    jax.block_until_ready((out2, hx2))
    ref_out2, ref_hx2 = _ref_block(inp, params, hx_prev=None)
    assert jnp.allclose(hx2, ref_hx2, atol=2e-3, rtol=2e-3)
    assert jnp.allclose(out2, ref_out2, atol=2e-3, rtol=2e-3)

    print("KERNEL_OK")
</pallas_src>

<mosaic_0001>
module attributes {stable_mosaic.version = 11 : i64} {
  func.func @_fused_block_kernel(%arg0: i32, %arg1: memref<8x128xf32, #tpu.memory_space<vmem>>, %arg2: memref<8x128xf32, #tpu.memory_space<vmem>>, %arg3: memref<1x128xf32, #tpu.memory_space<vmem>>, %arg4: memref<128x256xf32, #tpu.memory_space<vmem>>, %arg5: memref<1x128xf32, #tpu.memory_space<vmem>>, %arg6: memref<128x256xf32, #tpu.memory_space<vmem>>, %arg7: memref<128x128xf32, #tpu.memory_space<vmem>>, %arg8: memref<8x128xf32, #tpu.memory_space<vmem>>, %arg9: memref<8x128xf32, #tpu.memory_space<vmem>>) attributes {dimension_semantics = [#tpu.dimension_semantics<parallel>], iteration_bounds = array<i64: 2>, scalar_prefetch = 0 : i64, scratch_operands = 0 : i64, tpu.core_type = #tpu.core_type<tc>, window_params = [{transform_indices = @transform_0, window_bounds = array<i64: 8, 128>}, {transform_indices = @transform_1, window_bounds = array<i64: 8, 128>}, {pipeline_mode = #tpu.pipeline_mode<synchronous>, transform_indices = @transform_2, window_bounds = array<i64: 1, 128>}, {pipeline_mode = #tpu.pipeline_mode<synchronous>, transform_indices = @transform_3, window_bounds = array<i64: 128, 256>}, {pipeline_mode = #tpu.pipeline_mode<synchronous>, transform_indices = @transform_4, window_bounds = array<i64: 1, 128>}, {pipeline_mode = #tpu.pipeline_mode<synchronous>, transform_indices = @transform_5, window_bounds = array<i64: 128, 256>}, {pipeline_mode = #tpu.pipeline_mode<synchronous>, transform_indices = @transform_6, window_bounds = array<i64: 128, 128>}, {transform_indices = @transform_7, window_bounds = array<i64: 8, 128>}, {transform_indices = @transform_8, window_bounds = array<i64: 8, 128>}]} {
    %c0 = arith.constant 0 : index
    %c0_0 = arith.constant 0 : index
    %0 = vector.load %arg1[%c0, %c0_0] : memref<8x128xf32, #tpu.memory_space<vmem>>, vector<8x128xf32>
    %1 = arith.mulf %0, %0 : vector<8x128xf32>
    %cst = arith.constant dense<0.000000e+00> : vector<8xf32>
    %2 = vector.multi_reduction <add>, %1, %cst [1] : vector<8x128xf32> to vector<8xf32>
    %3 = vector.shape_cast %2 : vector<8xf32> to vector<8x1xf32>
    %cst_1 = arith.constant 1.280000e+02 : f32
    %4 = vector.broadcast %cst_1 : f32 to vector<8x1xf32>
    %5 = arith.divf %3, %4 : vector<8x1xf32>
    %cst_2 = arith.constant 9.99999997E-7 : f32
    %6 = vector.broadcast %cst_2 : f32 to vector<8x1xf32>
    %7 = arith.addf %5, %6 : vector<8x1xf32>
    %8 = math.rsqrt %7 : vector<8x1xf32>
    %9 = vector.broadcast %8 : vector<8x1xf32> to vector<8x128xf32>
    %10 = arith.mulf %0, %9 : vector<8x128xf32>
    %c0_3 = arith.constant 0 : index
    %c0_4 = arith.constant 0 : index
    %11 = vector.load %arg3[%c0_3, %c0_4] : memref<1x128xf32, #tpu.memory_space<vmem>>, vector<1x128xf32>
    %12 = vector.broadcast %11 : vector<1x128xf32> to vector<8x128xf32>
    %13 = arith.mulf %10, %12 : vector<8x128xf32>
    %c0_5 = arith.constant 0 : index
    %c0_6 = arith.constant 0 : index
    %14 = vector.load %arg4[%c0_5, %c0_6] : memref<128x256xf32, #tpu.memory_space<vmem>>, vector<128x256xf32>
    %cst_7 = arith.constant dense<0.000000e+00> : vector<8x256xf32>
    %15 = tpu.matmul %13, %14, %cst_7 {dimension_numbers = #tpu.dot_dimension_numbers<[1], [0], [0], [1], [0, 0, 1, 1], [], []>} : vector<8x128xf32>, vector<128x256xf32>, vector<8x256xf32> -> vector<8x256xf32>
    %16 = vector.extract_strided_slice %15 {offsets = [0, 0], sizes = [8, 128], strides = [1, 1]} : vector<8x256xf32> to vector<8x128xf32>
    %17 = arith.negf %16 : vector<8x128xf32>
    %18 = math.exp %17 : vector<8x128xf32>
    %cst_8 = arith.constant 1.000000e+00 : f32
    %19 = vector.broadcast %cst_8 : f32 to vector<8x128xf32>
    %20 = arith.addf %19, %18 : vector<8x128xf32>
    %21 = arith.divf %19, %20 : vector<8x128xf32>
    %22 = vector.extract_strided_slice %15 {offsets = [0, 128], sizes = [8, 128], strides = [1, 1]} : vector<8x256xf32> to vector<8x128xf32>
    %cst_9 = arith.constant 1.000000e+00 : f32
    %23 = vector.broadcast %cst_9 : f32 to vector<8x128xf32>
    %24 = arith.subf %23, %21 : vector<8x128xf32>
    %c0_10 = arith.constant 0 : index
    %c0_11 = arith.constant 0 : index
    %25 = vector.load %arg2[%c0_10, %c0_11] : memref<8x128xf32, #tpu.memory_space<vmem>>, vector<8x128xf32>
    %26 = arith.mulf %24, %25 : vector<8x128xf32>
    %27 = arith.mulf %21, %22 : vector<8x128xf32>
    %28 = arith.addf %26, %27 : vector<8x128xf32>
    %c0_12 = arith.constant 0 : index
    %c0_13 = arith.constant 0 : index
    %29 = vector.load %arg9[%c0_12, %c0_13] : memref<8x128xf32, #tpu.memory_space<vmem>>, vector<8x128xf32>
    tpu.vector_store %arg9[%c0_12, %c0_13], %28 {strides = array<i32>} : memref<8x128xf32, #tpu.memory_space<vmem>>, vector<8x128xf32>,
    %30 = arith.addf %0, %28 : vector<8x128xf32>
    %31 = arith.mulf %30, %30 : vector<8x128xf32>
    %cst_14 = arith.constant dense<0.000000e+00> : vector<8xf32>
    %32 = vector.multi_reduction <add>, %31, %cst_14 [1] : vector<8x128xf32> to vector<8xf32>
    %33 = vector.shape_cast %32 : vector<8xf32> to vector<8x1xf32>
    %cst_15 = arith.constant 1.280000e+02 : f32
    %34 = vector.broadcast %cst_15 : f32 to vector<8x1xf32>
    %35 = arith.divf %33, %34 : vector<8x1xf32>
    %cst_16 = arith.constant 9.99999997E-7 : f32
    %36 = vector.broadcast %cst_16 : f32 to vector<8x1xf32>
    %37 = arith.addf %35, %36 : vector<8x1xf32>
    %38 = math.rsqrt %37 : vector<8x1xf32>
    %39 = vector.broadcast %38 : vector<8x1xf32> to vector<8x128xf32>
    %40 = arith.mulf %30, %39 : vector<8x128xf32>
    %c0_17 = arith.constant 0 : index
    %c0_18 = arith.constant 0 : index
    %41 = vector.load %arg5[%c0_17, %c0_18] : memref<1x128xf32, #tpu.memory_space<vmem>>, vector<1x128xf32>
    %42 = vector.broadcast %41 : vector<1x128xf32> to vector<8x128xf32>
    %43 = arith.mulf %40, %42 : vector<8x128xf32>
    %c0_19 = arith.constant 0 : index
    %c0_20 = arith.constant 0 : index
    %44 = vector.load %arg6[%c0_19, %c0_20] : memref<128x256xf32, #tpu.memory_space<vmem>>, vector<128x256xf32>
    %cst_21 = arith.constant dense<0.000000e+00> : vector<8x256xf32>
    %45 = tpu.matmul %43, %44, %cst_21 {dimension_numbers = #tpu.dot_dimension_numbers<[1], [0], [0], [1], [0, 0, 1, 1], [], []>} : vector<8x128xf32>, vector<128x256xf32>, vector<8x256xf32> -> vector<8x256xf32>
    %46 = vector.extract_strided_slice %45 {offsets = [0, 0], sizes = [8, 128], strides = [1, 1]} : vector<8x256xf32> to vector<8x128xf32>
    %47 = vector.extract_strided_slice %45 {offsets = [0, 128], sizes = [8, 128], strides = [1, 1]} : vector<8x256xf32> to vector<8x128xf32>
    %48 = arith.negf %46 : vector<8x128xf32>
    %49 = math.exp %48 : vector<8x128xf32>
    %cst_22 = arith.constant 1.000000e+00 : f32
    %50 = vector.broadcast %cst_22 : f32 to vector<8x128xf32>
    %51 = arith.addf %50, %49 : vector<8x128xf32>
    %52 = arith.divf %50, %51 : vector<8x128xf32>
    %53 = arith.mulf %46, %52 : vector<8x128xf32>
    %54 = arith.mulf %53, %47 : vector<8x128xf32>
    %c0_23 = arith.constant 0 : index
    %c0_24 = arith.constant 0 : index
    %55 = vector.load %arg7[%c0_23, %c0_24] : memref<128x128xf32, #tpu.memory_space<vmem>>, vector<128x128xf32>
    %cst_25 = arith.constant dense<0.000000e+00> : vector<8x128xf32>
    %56 = tpu.matmul %54, %55, %cst_25 {dimension_numbers = #tpu.dot_dimension_numbers<[1], [0], [0], [1], [0, 0, 1, 1], [], []>} : vector<8x128xf32>, vector<128x128xf32>, vector<8x128xf32> -> vector<8x128xf32>
    %57 = arith.addf %30, %56 : vector<8x128xf32>
    %c0_26 = arith.constant 0 : index
    %c0_27 = arith.constant 0 : index
    %58 = vector.load %arg8[%c0_26, %c0_27] : memref<8x128xf32, #tpu.memory_space<vmem>>, vector<8x128xf32>
    tpu.vector_store %arg8[%c0_26, %c0_27], %57 {strides = array<i32>} : memref<8x128xf32, #tpu.memory_space<vmem>>, vector<8x128xf32>,
    return
  }
  func.func @transform_0(%arg0: i32) -> (i32, i32) {
    %c0_i32 = arith.constant 0 : i32
    %c0_i32_0 = arith.constant 0 : i32
    return %arg0, %c0_i32 : i32, i32
  }
  func.func @transform_1(%arg0: i32) -> (i32, i32) {
    %c0_i32 = arith.constant 0 : i32
    %c0_i32_0 = arith.constant 0 : i32
    return %arg0, %c0_i32 : i32, i32
  }
  func.func @transform_2(%arg0: i32) -> (i32, i32) {
    %c0_i32 = arith.constant 0 : i32
    %c0_i32_0 = arith.constant 0 : i32
    %c0_i32_1 = arith.constant 0 : i32
    return %c0_i32, %c0_i32_0 : i32, i32
  }
  func.func @transform_3(%arg0: i32) -> (i32, i32) {
    %c0_i32 = arith.constant 0 : i32
    %c0_i32_0 = arith.constant 0 : i32
    %c0_i32_1 = arith.constant 0 : i32
    return %c0_i32, %c0_i32_0 : i32, i32
  }
  func.func @transform_4(%arg0: i32) -> (i32, i32) {
    %c0_i32 = arith.constant 0 : i32
    %c0_i32_0 = arith.constant 0 : i32
    %c0_i32_1 = arith.constant 0 : i32
    return %c0_i32, %c0_i32_0 : i32, i32
  }
  func.func @transform_5(%arg0: i32) -> (i32, i32) {
    %c0_i32 = arith.constant 0 : i32
    %c0_i32_0 = arith.constant 0 : i32
    %c0_i32_1 = arith.constant 0 : i32
    return %c0_i32, %c0_i32_0 : i32, i32
  }
  func.func @transform_6(%arg0: i32) -> (i32, i32) {
    %c0_i32 = arith.constant 0 : i32
    %c0_i32_0 = arith.constant 0 : i32
    %c0_i32_1 = arith.constant 0 : i32
    return %c0_i32, %c0_i32_0 : i32, i32
  }
  func.func @transform_7(%arg0: i32) -> (i32, i32) {
    %c0_i32 = arith.constant 0 : i32
    %c0_i32_0 = arith.constant 0 : i32
    return %arg0, %c0_i32 : i32, i32
  }
  func.func @transform_8(%arg0: i32) -> (i32, i32) {
    %c0_i32 = arith.constant 0 : i32
    %c0_i32_0 = arith.constant 0 : i32
    return %arg0, %c0_i32 : i32, i32
  }
}

</mosaic_0001>

<llo_original>
// kernel: tpu_custom_call.1
$region0: #{tpu_custom_call.1}
  #allocation0 [shape = 'u32[]', space=smem, size = 0x4, offset = 0x4, fixed_abs, tag = 'smem constant byte address 0x4 - core index']
  #allocation1 [shape = 'u32[144,128]{1,0:T(1,128)}', space=vmem, size = 0x12000, scoped, tag = 'internal scratch']
  %s0 = inlined_call_operand.hbm [shape: f32[16,128], index: 0, kind: input, shape index: {}]
  %s1 = inlined_call_operand.hbm [shape: f32[16,128], index: 1, kind: input, shape index: {}]
  %s2 = inlined_call_operand.hbm [shape: f32[1,128], index: 2, kind: input, shape index: {}]
  %s3 = inlined_call_operand.hbm [shape: f32[128,256], index: 3, kind: input, shape index: {}]
  %s4 = inlined_call_operand.hbm [shape: f32[1,128], index: 4, kind: input, shape index: {}]
  %s5 = inlined_call_operand.hbm [shape: f32[128,256], index: 5, kind: input, shape index: {}]
  %s6 = inlined_call_operand.hbm [shape: f32[128,128], index: 6, kind: input, shape index: {}]
  %s7 = inlined_call_operand.hbm [shape: f32[16,128], index: 7, kind: output, shape index: {0}]
  %s8 = inlined_call_operand.hbm [shape: f32[16,128], index: 8, kind: output, shape index: {1}]
  %9 = xla_tuple %s7, %s8
  %s10 = sld [smem:[#allocation0]]
  $region97: #{tpu_custom_call.1} parent=0
    _
  %s12 = ssub.s32 1, %s10
  %s13 = scalar_select 0, %s12, %s10
  $region1: #{tpu_custom_call.1} parent=0
    #allocation2 [shape = 'u8[8192]{0}', space=vmem, size = 0x2000, scoped, tag = 'input window, operand 0']
    #allocation3 [shape = 's32[2]{0}', space=sflag, size = 0x8, scoped, tag = 'scoped memory for tpu_custom_call.1']
    #allocation4 [shape = 's32[2]{0}', space=sflag, size = 0x8, scoped, tag = 'scoped memory for tpu_custom_call.1']
    #allocation5 [shape = 'u8[8192]{0}', space=vmem, size = 0x2000, scoped, tag = 'input window, operand 1']
    #allocation6 [shape = 's32[2]{0}', space=sflag, size = 0x8, scoped, tag = 'scoped memory for tpu_custom_call.1']
    #allocation7 [shape = 'u8[512]{0}', space=vmem, size = 0x400, scoped, tag = 'input window, operand 2, single buffered']
    #allocation8 [shape = 'u8[131072]{0}', space=vmem, size = 0x20000, scoped, tag = 'input window, operand 3, single buffered']
    #allocation9 [shape = 's32[1]{0}', space=sflag, size = 0x4, scoped, tag = 'scoped memory for tpu_custom_call.1']
    #allocation10 [shape = 'u8[512]{0}', space=vmem, size = 0x400, scoped, tag = 'input window, operand 4, single buffered']
    #allocation11 [shape = 'u8[131072]{0}', space=vmem, size = 0x20000, scoped, tag = 'input window, operand 5, single buffered']
    #allocation12 [shape = 's32[1]{0}', space=sflag, size = 0x4, scoped, tag = 'scoped memory for tpu_custom_call.1']
    #allocation13 [shape = 'u8[65536]{0}', space=vmem, size = 0x10000, scoped, tag = 'input window, operand 6, single buffered']
    #allocation14 [shape = 'u8[8192]{0}', space=vmem, size = 0x2000, scoped, tag = 'output window, operand 0']
    #allocation15 [shape = 'u8[8192]{0}', space=vmem, size = 0x2000, scoped, tag = 'output window, operand 1']
    #allocation16 [shape = 's32[2]{0}', space=sflag, size = 0x8, scoped, tag = 'scoped memory for tpu_custom_call.1']
    %14 = vsyncpa [#allocation3], 0
    %s15 = scalar_lea.sflag [#allocation3], 1
    %16 = vsyncpa %s15, 0
    %17 = vsyncpa [#allocation6], 0
    %s18 = scalar_lea.sflag [#allocation6], 1
    %19 = vsyncpa %s18, 0
    %20 = vsyncpa [#allocation9], 0
    %21 = vsyncpa [#allocation12], 0
    %22 = vsyncpa [#allocation4], 0
    %s23 = scalar_lea.sflag [#allocation4], 1
    %24 = vsyncpa %s23, 0
    %25 = vsyncpa [#allocation16], 0
    %s26 = scalar_lea.sflag [#allocation16], 1
    %27 = vsyncpa %s26, 0
    loop: start=0, step=1, limit=4
    $region2: #{tpu_custom_call.1} parent=1 // loop_pre_header
      _
    $region3: #{tpu_custom_call.1} parent=1 // loop_header
      %s29 = sphi 0, %s33
      %p30 = scmp.ge.s32.totalorder %s29, 4
      %s39 = sphi 0, %s41
      %s42 = sphi 0, %s39
      %s43 = sphi 0, %s42
      %s59 = sphi 0, %s43
      %s65 = sphi 0, %s67
      %s68 = sphi 0, %s65
      %s69 = sphi 0, %s68
      %s85 = sphi 0, %s69
      %s89 = sphi 0, %s89
      %s91 = sphi 0, %s89
      %s92 = sphi 0, %s91
      %s106 = sphi 0, %s92
      %s110 = sphi 0, %s110
      %s112 = sphi 0, %s110
      %s113 = sphi 0, %s112
      %s127 = sphi 0, %s113
      %s131 = sphi 0, %s131
      %s133 = sphi 0, %s131
      %s134 = sphi 0, %s133
      %s148 = sphi 0, %s134
      %s152 = sphi 0, %s152
      %s154 = sphi 0, %s152
      %s155 = sphi 0, %s154
      %s169 = sphi 0, %s155
      %s173 = sphi 0, %s173
      %s175 = sphi 0, %s173
      %s176 = sphi 0, %s175
      %s190 = sphi 0, %s176
      %s196 = sphi 0, %s198
      %s199 = sphi 0, %s196
      %s200 = sphi 0, %s199
      %s216 = sphi 0, %s200
      %s222 = sphi 0, %s224
      %s225 = sphi 0, %s222
      %s226 = sphi 0, %s225
      %s242 = sphi 0, %s226
    $region4: #{tpu_custom_call.1} parent=1 // loop_header_branch
      %32 = sbr.rel (%p30) target = $region8
    $region5: #{tpu_custom_call.1} parent=1 // loop_body
      %s34 = ssub.s32 %s29, 1
      %s35 = ssub.s32 %s29, 2
      %s36 = sadd.s32 %s29, 1
      %s37 = ssub.s32 %s29, %s36
      %p38 = scmp.eq.s32.totalorder %s37, 0
      %s40 = sadd.s32 %s39, 1
      %s41 = scalar_select %p38, %s39, %s40
      %p44 = pneg %p38
      %p45 = scmp.eq.s32.totalorder %s29, 1
      %p46 = por %p44, %p45
      %p47 = scmp.ne.s32.totalorder %s39, %s42
      %p48 = scmp.eq.s32.totalorder %s29, 0
      %p49 = por %p47, %p48
      %p50 = scmp.ne.s32.totalorder %s39, %s42
      %p51 = scmp.eq.s32.totalorder %s34, 1
      %p52 = por %p50, %p51
      %p53 = scmp.ne.s32.totalorder %s42, %s43
      %p54 = scmp.eq.s32.totalorder %s34, 0
      %p55 = por %p53, %p54
      %p56 = scmp.ne.s32.totalorder %s42, %s43
      %p57 = scmp.eq.s32.totalorder %s35, 1
      %p58 = por %p56, %p57
      %p60 = scmp.ne.s32.totalorder %s43, %s59
      %p61 = scmp.eq.s32.totalorder %s35, 0
      %p62 = por %p60, %p61
      %s63 = ssub.s32 %s29, %s36
      %p64 = scmp.eq.s32.totalorder %s63, 0
      %s66 = sadd.s32 %s65, 1
      %s67 = scalar_select %p64, %s65, %s66
      %p70 = pneg %p64
      %p71 = scmp.eq.s32.totalorder %s29, 1
      %p72 = por %p70, %p71
      %p73 = scmp.ne.s32.totalorder %s65, %s68
      %p74 = scmp.eq.s32.totalorder %s29, 0
      %p75 = por %p73, %p74
      %p76 = scmp.ne.s32.totalorder %s65, %s68
      %p77 = scmp.eq.s32.totalorder %s34, 1
      %p78 = por %p76, %p77
      %p79 = scmp.ne.s32.totalorder %s68, %s69
      %p80 = scmp.eq.s32.totalorder %s34, 0
      %p81 = por %p79, %p80
      %p82 = scmp.ne.s32.totalorder %s68, %s69
      %p83 = scmp.eq.s32.totalorder %s35, 1
      %p84 = por %p82, %p83
      %p86 = scmp.ne.s32.totalorder %s69, %s85
      %p87 = scmp.eq.s32.totalorder %s35, 0
      %p88 = por %p86, %p87
      %s90 = sadd.s32 %s89, 1
      %p93 = scmp.eq.s32.totalorder %s29, 1
      %p94 = scmp.ne.s32.totalorder %s89, %s91
      %p95 = scmp.eq.s32.totalorder %s29, 0
      %p96 = por %p94, %p95
      %p97 = scmp.ne.s32.totalorder %s89, %s91
      %p98 = scmp.eq.s32.totalorder %s34, 1
      %p99 = por %p97, %p98
      %p100 = scmp.ne.s32.totalorder %s91, %s92
      %p101 = scmp.eq.s32.totalorder %s34, 0
      %p102 = por %p100, %p101
      %p103 = scmp.ne.s32.totalorder %s91, %s92
      %p104 = scmp.eq.s32.totalorder %s35, 1
      %p105 = por %p103, %p104
      %p107 = scmp.ne.s32.totalorder %s92, %s106
      %p108 = scmp.eq.s32.totalorder %s35, 0
      %p109 = por %p107, %p108
      %s111 = sadd.s32 %s110, 1
      %p114 = scmp.eq.s32.totalorder %s29, 1
      %p115 = scmp.ne.s32.totalorder %s110, %s112
      %p116 = scmp.eq.s32.totalorder %s29, 0
      %p117 = por %p115, %p116
      %p118 = scmp.ne.s32.totalorder %s110, %s112
      %p119 = scmp.eq.s32.totalorder %s34, 1
      %p120 = por %p118, %p119
      %p121 = scmp.ne.s32.totalorder %s112, %s113
      %p122 = scmp.eq.s32.totalorder %s34, 0
      %p123 = por %p121, %p122
      %p124 = scmp.ne.s32.totalorder %s112, %s113
      %p125 = scmp.eq.s32.totalorder %s35, 1
      %p126 = por %p124, %p125
      %p128 = scmp.ne.s32.totalorder %s113, %s127
      %p129 = scmp.eq.s32.totalorder %s35, 0
      %p130 = por %p128, %p129
      %s132 = sadd.s32 %s131, 1
      %p135 = scmp.eq.s32.totalorder %s29, 1
      %p136 = scmp.ne.s32.totalorder %s131, %s133
      %p137 = scmp.eq.s32.totalorder %s29, 0
      %p138 = por %p136, %p137
      %p139 = scmp.ne.s32.totalorder %s131, %s133
      %p140 = scmp.eq.s32.totalorder %s34, 1
      %p141 = por %p139, %p140
      %p142 = scmp.ne.s32.totalorder %s133, %s134
      %p143 = scmp.eq.s32.totalorder %s34, 0
      %p144 = por %p142, %p143
      %p145 = scmp.ne.s32.totalorder %s133, %s134
      %p146 = scmp.eq.s32.totalorder %s35, 1
      %p147 = por %p145, %p146
      %p149 = scmp.ne.s32.totalorder %s134, %s148
      %p150 = scmp.eq.s32.totalorder %s35, 0
      %p151 = por %p149, %p150
      %s153 = sadd.s32 %s152, 1
      %p156 = scmp.eq.s32.totalorder %s29, 1
      %p157 = scmp.ne.s32.totalorder %s152, %s154
      %p158 = scmp.eq.s32.totalorder %s29, 0
      %p159 = por %p157, %p158
      %p160 = scmp.ne.s32.totalorder %s152, %s154
      %p161 = scmp.eq.s32.totalorder %s34, 1
      %p162 = por %p160, %p161
      %p163 = scmp.ne.s32.totalorder %s154, %s155
      %p164 = scmp.eq.s32.totalorder %s34, 0
      %p165 = por %p163, %p164
      %p166 = scmp.ne.s32.totalorder %s154, %s155
      %p167 = scmp.eq.s32.totalorder %s35, 1
      %p168 = por %p166, %p167
      %p170 = scmp.ne.s32.totalorder %s155, %s169
      %p171 = scmp.eq.s32.totalorder %s35, 0
      %p172 = por %p170, %p171
      %s174 = sadd.s32 %s173, 1
      %p177 = scmp.eq.s32.totalorder %s29, 1
      %p178 = scmp.ne.s32.totalorder %s173, %s175
      %p179 = scmp.eq.s32.totalorder %s29, 0
      %p180 = por %p178, %p179
      %p181 = scmp.ne.s32.totalorder %s173, %s175
      %p182 = scmp.eq.s32.totalorder %s34, 1
      %p183 = por %p181, %p182
      %p184 = scmp.ne.s32.totalorder %s175, %s176
      %p185 = scmp.eq.s32.totalorder %s34, 0
      %p186 = por %p184, %p185
      %p187 = scmp.ne.s32.totalorder %s175, %s176
      %p188 = scmp.eq.s32.totalorder %s35, 1
      %p189 = por %p187, %p188
      %p191 = scmp.ne.s32.totalorder %s176, %s190
      %p192 = scmp.eq.s32.totalorder %s35, 0
      %p193 = por %p191, %p192
      %s194 = ssub.s32 %s29, %s36
      %p195 = scmp.eq.s32.totalorder %s194, 0
      %s197 = sadd.s32 %s196, 1
      %s198 = scalar_select %p195, %s196, %s197
      %p201 = pneg %p195
      %p202 = scmp.eq.s32.totalorder %s29, 1
      %p203 = por %p201, %p202
      %p204 = scmp.ne.s32.totalorder %s196, %s199
      %p205 = scmp.eq.s32.totalorder %s29, 0
      %p206 = por %p204, %p205
      %p207 = scmp.ne.s32.totalorder %s196, %s199
      %p208 = scmp.eq.s32.totalorder %s34, 1
      %p209 = por %p207, %p208
      %p210 = scmp.ne.s32.totalorder %s199, %s200
      %p211 = scmp.eq.s32.totalorder %s34, 0
      %p212 = por %p210, %p211
      %p213 = scmp.ne.s32.totalorder %s199, %s200
      %p214 = scmp.eq.s32.totalorder %s35, 1
      %p215 = por %p213, %p214
      %p217 = scmp.ne.s32.totalorder %s200, %s216
      %p218 = scmp.eq.s32.totalorder %s35, 0
      %p219 = por %p217, %p218
      %s220 = ssub.s32 %s29, %s36
      %p221 = scmp.eq.s32.totalorder %s220, 0
      %s223 = sadd.s32 %s222, 1
      %s224 = scalar_select %p221, %s222, %s223
      %p227 = pneg %p221
      %p228 = scmp.eq.s32.totalorder %s29, 1
      %p229 = por %p227, %p228
      %p230 = scmp.ne.s32.totalorder %s222, %s225
      %p231 = scmp.eq.s32.totalorder %s29, 0
      %p232 = por %p230, %p231
      %p233 = scmp.ne.s32.totalorder %s222, %s225
      %p234 = scmp.eq.s32.totalorder %s34, 1
      %p235 = por %p233, %p234
      %p236 = scmp.ne.s32.totalorder %s225, %s226
      %p237 = scmp.eq.s32.totalorder %s34, 0
      %p238 = por %p236, %p237
      %p239 = scmp.ne.s32.totalorder %s225, %s226
      %p240 = scmp.eq.s32.totalorder %s35, 1
      %p241 = por %p239, %p240
      %p243 = scmp.ne.s32.totalorder %s226, %s242
      %p244 = scmp.eq.s32.totalorder %s35, 0
      %p245 = por %p243, %p244
      %p246 = scmp.le.s32.totalorder 1, %s29
      %p247 = scmp.lt.s32.totalorder %s29, 3
      %p248 = pnand %p246, %p247
      %p249 = pneg %p248
      // Predicated region
      $region9: #{tpu_custom_call.1} parent=5 // pred_check
        _
      $region10: #{tpu_custom_call.1} parent=5 // pred_check_branch
        %251 = sbr.rel (%p248) target = $region12
      $region11: #{tpu_custom_call.1} parent=5 // pred_region
        %s252 = ssub.s32 %s29, 1
        // Predicated region
        $region13: #{tpu_custom_call.1} parent=11 // pred_check
          %p253 = pneg %p102
        $region14: #{tpu_custom_call.1} parent=11 // pred_check_branch
          %255 = sbr.rel (%p253) target = $region16
        $region15: #{tpu_custom_call.1} parent=11 // pred_region
          %s257 = ssub.s32 16, 16
          %258 = vsyncadd [#allocation6], %s257
          %s260 = sshll.u32 [#allocation7], 4
          %s261 = int_to_ptr.vmem [resolvable:$true] %s260
          %263 = dma.hbm_to_vmem [thread:$0]  %s2, 16, %s261, [#allocation6]
        $region16: #{tpu_custom_call.1} parent=11 // pred_fallthru
          _
        // Predicated region
        $region17: #{tpu_custom_call.1} parent=11 // pred_check
          %p264 = pneg %p123
        $region18: #{tpu_custom_call.1} parent=11 // pred_check_branch
          %266 = sbr.rel (%p264) target = $region20
        $region19: #{tpu_custom_call.1} parent=11 // pred_region
          %s268 = ssub.s32 4096, 4096
          %269 = vsyncadd [#allocation9], %s268
          %s270 = sshll.u32 [#allocation8], 4
          %s271 = int_to_ptr.vmem [resolvable:$true] %s270
          %276 = dma.hbm_to_vmem [thread:$0]  %s3, 4096, %s271, [#allocation9], 256, 256, 16
        $region20: #{tpu_custom_call.1} parent=11 // pred_fallthru
          _
        // Predicated region
        $region21: #{tpu_custom_call.1} parent=11 // pred_check
          %p277 = pneg %p144
        $region22: #{tpu_custom_call.1} parent=11 // pred_check_branch
          %279 = sbr.rel (%p277) target = $region24
        $region23: #{tpu_custom_call.1} parent=11 // pred_region
          %s281 = ssub.s32 16, 16
          %282 = vsyncadd [#allocation9], %s281
          %s284 = sshll.u32 [#allocation10], 4
          %s285 = int_to_ptr.vmem [resolvable:$true] %s284
          %287 = dma.hbm_to_vmem [thread:$0]  %s4, 16, %s285, [#allocation9]
        $region24: #{tpu_custom_call.1} parent=11 // pred_fallthru
          _
        // Predicated region
        $region25: #{tpu_custom_call.1} parent=11 // pred_check
          %p288 = pneg %p165
        $region26: #{tpu_custom_call.1} parent=11 // pred_check_branch
          %290 = sbr.rel (%p288) target = $region28
        $region27: #{tpu_custom_call.1} parent=11 // pred_region
          %s292 = ssub.s32 4096, 4096
          %293 = vsyncadd [#allocation12], %s292
          %s294 = sshll.u32 [#allocation11], 4
          %s295 = int_to_ptr.vmem [resolvable:$true] %s294
          %300 = dma.hbm_to_vmem [thread:$0]  %s5, 4096, %s295, [#allocation12], 256, 256, 16
        $region28: #{tpu_custom_call.1} parent=11 // pred_fallthru
          _
        // Predicated region
        $region29: #{tpu_custom_call.1} parent=11 // pred_check
          %p301 = pneg %p186
        $region30: #{tpu_custom_call.1} parent=11 // pred_check_branch
          %303 = sbr.rel (%p301) target = $region32
        $region31: #{tpu_custom_call.1} parent=11 // pred_region
          %s305 = ssub.s32 2048, 2048
          %306 = vsyncadd [#allocation12], %s305
          %s307 = sshll.u32 [#allocation13], 4
          %s308 = int_to_ptr.vmem [resolvable:$true] %s307
          %313 = dma.hbm_to_vmem [thread:$0]  %s6, 2048, %s308, [#allocation12], 128, 128, 8
        $region32: #{tpu_custom_call.1} parent=11 // pred_fallthru
          _
      $region12: #{tpu_custom_call.1} parent=5 // pred_fallthru
        _
      %p314 = scmp.lt.s32.totalorder %s29, 2
      // Predicated region
      $region33: #{tpu_custom_call.1} parent=5 // pred_check
        %p315 = pneg %p314
      $region34: #{tpu_custom_call.1} parent=5 // pred_check_branch
        %317 = sbr.rel (%p315) target = $region36
      $region35: #{tpu_custom_call.1} parent=5 // pred_region
        // Predicated region
        $region37: #{tpu_custom_call.1} parent=35 // pred_check
          %p318 = pneg %p49
        $region38: #{tpu_custom_call.1} parent=35 // pred_check_branch
          %320 = sbr.rel (%p318) target = $region40
        $region39: #{tpu_custom_call.1} parent=35 // pred_region
          %s321 = sand.u32 %s39, 1
          %s322 = scalar_lea.sflag [#allocation3], %s321
          %s323 = sand.u32 %s39, 1
          %s324 = smul.addr %s323, 8
          %s325 = scalar_lea.vmem [#allocation2], %s324
          %s327 = ssub.s32 128, 128
          %328 = vsyncadd %s322, %s327
          %s329 = smul.addr %s29, 128
          %s330 = scalar_lea.hbm %s0, %s329
          %s332 = sshll.u32 %s325, 4
          %s333 = int_to_ptr.vmem [resolvable:$true] %s332
          %335 = dma.hbm_to_vmem [thread:$0]  %s330, 128, %s333, %s322
        $region40: #{tpu_custom_call.1} parent=35 // pred_fallthru
          _
        // Predicated region
        $region41: #{tpu_custom_call.1} parent=35 // pred_check
          %p336 = pneg %p75
        $region42: #{tpu_custom_call.1} parent=35 // pred_check_branch
          %338 = sbr.rel (%p336) target = $region44
        $region43: #{tpu_custom_call.1} parent=35 // pred_region
          %s339 = sand.u32 %s29, 1
          %s340 = scalar_lea.sflag [#allocation6], %s339
          %s341 = sand.u32 %s65, 1
          %s342 = smul.addr %s341, 8
          %s343 = scalar_lea.vmem [#allocation5], %s342
          %s345 = ssub.s32 128, 128
          %346 = vsyncadd %s340, %s345
          %s347 = smul.addr %s29, 128
          %s348 = scalar_lea.hbm %s1, %s347
          %s350 = sshll.u32 %s343, 4
          %s351 = int_to_ptr.vmem [resolvable:$true] %s350
          %353 = dma.hbm_to_vmem [thread:$0]  %s348, 128, %s351, %s340
        $region44: #{tpu_custom_call.1} parent=35 // pred_fallthru
          _
      $region36: #{tpu_custom_call.1} parent=5 // pred_fallthru
        _
      %p354 = scmp.le.s32.totalorder 1, %s29
      %p355 = scmp.lt.s32.totalorder %s29, 3
      %p356 = pnand %p354, %p355
      %p357 = pneg %p356
      // Predicated region
      $region45: #{tpu_custom_call.1} parent=5 // pred_check
        _
      $region46: #{tpu_custom_call.1} parent=5 // pred_check_branch
        %359 = sbr.rel (%p356) target = $region48
      $region47: #{tpu_custom_call.1} parent=5 // pred_region
        %s360 = ssub.s32 %s29, 1
        %s361 = sand.u32 %s42, 1
        %s362 = scalar_lea.sflag [#allocation3], %s361
        %s363 = sand.u32 %s42, 1
        %s364 = smul.addr %s363, 8
        %s365 = scalar_lea.vmem [#allocation2], %s364
        // Predicated region
        $region49: #{tpu_custom_call.1} parent=47 // pred_check
          %p366 = pneg %p55
        $region50: #{tpu_custom_call.1} parent=47 // pred_check_branch
          %368 = sbr.rel (%p366) target = $region52
        $region51: #{tpu_custom_call.1} parent=47 // pred_region
          %369 = dma.done %s362, 128
        $region52: #{tpu_custom_call.1} parent=47 // pred_fallthru
          _
        %s370 = sand.u32 %s34, 1
        %s371 = scalar_lea.sflag [#allocation6], %s370
        %s372 = sand.u32 %s68, 1
        %s373 = smul.addr %s372, 8
        %s374 = scalar_lea.vmem [#allocation5], %s373
        // Predicated region
        $region53: #{tpu_custom_call.1} parent=47 // pred_check
          %p375 = pneg %p81
        $region54: #{tpu_custom_call.1} parent=47 // pred_check_branch
          %377 = sbr.rel (%p375) target = $region56
        $region55: #{tpu_custom_call.1} parent=47 // pred_region
          %378 = dma.done %s371, 128
        $region56: #{tpu_custom_call.1} parent=47 // pred_fallthru
          _
        // Predicated region
        $region57: #{tpu_custom_call.1} parent=47 // pred_check
          %p379 = pneg %p102
        $region58: #{tpu_custom_call.1} parent=47 // pred_check_branch
          %381 = sbr.rel (%p379) target = $region60
        $region59: #{tpu_custom_call.1} parent=47 // pred_region
          %382 = dma.done [#allocation6], 16
        $region60: #{tpu_custom_call.1} parent=47 // pred_fallthru
          _
        // Predicated region
        $region61: #{tpu_custom_call.1} parent=47 // pred_check
          %p383 = pneg %p123
        $region62: #{tpu_custom_call.1} parent=47 // pred_check_branch
          %385 = sbr.rel (%p383) target = $region64
        $region63: #{tpu_custom_call.1} parent=47 // pred_region
          %386 = dma.done [#allocation9], 4096
        $region64: #{tpu_custom_call.1} parent=47 // pred_fallthru
          _
        // Predicated region
        $region65: #{tpu_custom_call.1} parent=47 // pred_check
          %p387 = pneg %p144
        $region66: #{tpu_custom_call.1} parent=47 // pred_check_branch
          %389 = sbr.rel (%p387) target = $region68
        $region67: #{tpu_custom_call.1} parent=47 // pred_region
          %390 = dma.done [#allocation9], 16
        $region68: #{tpu_custom_call.1} parent=47 // pred_fallthru
          _
        // Predicated region
        $region69: #{tpu_custom_call.1} parent=47 // pred_check
          %p391 = pneg %p165
        $region70: #{tpu_custom_call.1} parent=47 // pred_check_branch
          %393 = sbr.rel (%p391) target = $region72
        $region71: #{tpu_custom_call.1} parent=47 // pred_region
          %394 = dma.done [#allocation12], 4096
        $region72: #{tpu_custom_call.1} parent=47 // pred_fallthru
          _
        // Predicated region
        $region73: #{tpu_custom_call.1} parent=47 // pred_check
          %p395 = pneg %p186
        $region74: #{tpu_custom_call.1} parent=47 // pred_check_branch
          %397 = sbr.rel (%p395) target = $region76
        $region75: #{tpu_custom_call.1} parent=47 // pred_region
          %398 = dma.done [#allocation12], 2048
        $region76: #{tpu_custom_call.1} parent=47 // pred_fallthru
          _
        %s399 = sand.u32 %s42, 1
        %s400 = scalar_lea.sflag [#allocation3], %s399
        %s401 = sand.u32 %s42, 1
        %s402 = smul.addr %s401, 8
        %s403 = scalar_lea.vmem [#allocation2], %s402
        %p404 = pneg %p55
        %p405 = pneg %p52
        %s406 = sand.u32 %s34, 1
        %s407 = scalar_lea.sflag [#allocation6], %s406
        %s408 = sand.u32 %s68, 1
        %s409 = smul.addr %s408, 8
        %s410 = scalar_lea.vmem [#allocation5], %s409
        %p411 = pneg %p81
        %p412 = pneg %p78
        %p413 = pneg %p102
        %p414 = pneg %p99
        %p415 = pneg %p123
        %p416 = pneg %p120
        %p417 = pneg %p144
        %p418 = pneg %p141
        %p419 = pneg %p165
        %p420 = pneg %p162
        %p421 = pneg %p186
        %p422 = pneg %p183
        %p423 = pneg %p212
        %p424 = pneg %p209
        %s425 = sand.u32 %s199, 1
        %s426 = scalar_lea.sflag [#allocation4], %s425
        %s427 = sand.u32 %s199, 1
        %s428 = smul.addr %s427, 8
        %s429 = scalar_lea.vmem [#allocation14], %s428
        %p430 = pneg %p238
        %p431 = pneg %p235
        %s432 = sand.u32 %s225, 1
        %s433 = scalar_lea.sflag [#allocation16], %s432
        %s434 = sand.u32 %s225, 1
        %s435 = smul.addr %s434, 8
        %s436 = scalar_lea.vmem [#allocation15], %s435
        %v437 = vld [vmem:[%s365] sm:$0xff]
        %v438 = vmul.f32 %v437, %v437
        %439 = vadd.xlane.f32.xlu0 %v438
        %v440 = vpop.xlane.xlu0 %439
        %v441 = vrcp.pop 128.0
        %v442 = vmul.f32 %v440, %v441
        %v443 = vadd.f32 %v442, 1e-06
        %v444 = vrsqrt.pop %v443
        %v445 = vmul.f32 %v437, %v444
        %v446 = vld [vmem:[#allocation7] sm:$0x1]
        %v448 = vlaneseq
        %v449 = vshrl.u32 %v448, 7
        %v450 = vsub.s32 0, %v449
        %v451 = vrot.slane %v446, %v450
        %v453 = vmul.f32 %v445, %v451
        %v454 = vld [vmem:[#allocation8] sm:$0xff]
        %v455 = vld [vmem:[#allocation8 + $0x8] sm:$0xff]
        %v456 = vld [vmem:[#allocation8 + $0x10] sm:$0xff]
        %v457 = vld [vmem:[#allocation8 + $0x18] sm:$0xff]
        %v458 = vld [vmem:[#allocation8 + $0x20] sm:$0xff]
        %v459 = vld [vmem:[#allocation8 + $0x28] sm:$0xff]
        %v460 = vld [vmem:[#allocation8 + $0x30] sm:$0xff]
        %v461 = vld [vmem:[#allocation8 + $0x38] sm:$0xff]
        %v462 = vld [vmem:[#allocation8 + $0x40] sm:$0xff]
        %v463 = vld [vmem:[#allocation8 + $0x48] sm:$0xff]
        %v464 = vld [vmem:[#allocation8 + $0x50] sm:$0xff]
        %v465 = vld [vmem:[#allocation8 + $0x58] sm:$0xff]
        %v466 = vld [vmem:[#allocation8 + $0x60] sm:$0xff]
        %v467 = vld [vmem:[#allocation8 + $0x68] sm:$0xff]
        %v468 = vld [vmem:[#allocation8 + $0x70] sm:$0xff]
        %v469 = vld [vmem:[#allocation8 + $0x78] sm:$0xff]
        %v470 = vld [vmem:[#allocation8 + $0x80] sm:$0xff]
        %v471 = vld [vmem:[#allocation8 + $0x88] sm:$0xff]
        %v472 = vld [vmem:[#allocation8 + $0x90] sm:$0xff]
        %v473 = vld [vmem:[#allocation8 + $0x98] sm:$0xff]
        %v474 = vld [vmem:[#allocation8 + $0xa0] sm:$0xff]
        %v475 = vld [vmem:[#allocation8 + $0xa8] sm:$0xff]
        %v476 = vld [vmem:[#allocation8 + $0xb0] sm:$0xff]
        %v477 = vld [vmem:[#allocation8 + $0xb8] sm:$0xff]
        %v478 = vld [vmem:[#allocation8 + $0xc0] sm:$0xff]
        %v479 = vld [vmem:[#allocation8 + $0xc8] sm:$0xff]
        %v480 = vld [vmem:[#allocation8 + $0xd0] sm:$0xff]
        %v481 = vld [vmem:[#allocation8 + $0xd8] sm:$0xff]
        %v482 = vld [vmem:[#allocation8 + $0xe0] sm:$0xff]
        %v483 = vld [vmem:[#allocation8 + $0xe8] sm:$0xff]
        %v484 = vld [vmem:[#allocation8 + $0xf0] sm:$0xff]
        %v485 = vld [vmem:[#allocation8 + $0xf8] sm:$0xff]
        %486 = vmatprep.subr.mxu0 %v455
        %487 = vmatpush1.msra.mxu0 %v454
        %488 = vmatprep.subr.mxu0 %v457
        %489 = vmatpush1.msra.mxu0 %v456
        %490 = vmatprep.subr.mxu0 %v459
        %491 = vmatpush1.msra.mxu0 %v458
        %492 = vmatprep.subr.mxu0 %v461
        %493 = vmatpush1.msra.mxu0 %v460
        %494 = vmatprep.subr.mxu0 %v463
        %495 = vmatpush1.msra.mxu0 %v462
        %496 = vmatprep.subr.mxu0 %v465
        %497 = vmatpush1.msra.mxu0 %v464
        %498 = vmatprep.subr.mxu0 %v467
        %499 = vmatpush1.msra.mxu0 %v466
        %500 = vmatprep.subr.mxu0 %v469
        %501 = vmatpush1.msra.mxu0 %v468
        %502 = vmatprep.subr.mxu0 %v471
        %503 = vmatpush1.msra.mxu0 %v470
        %504 = vmatprep.subr.mxu0 %v473
        %505 = vmatpush1.msra.mxu0 %v472
        %506 = vmatprep.subr.mxu0 %v475
        %507 = vmatpush1.msra.mxu0 %v474
        %508 = vmatprep.subr.mxu0 %v477
        %509 = vmatpush1.msra.mxu0 %v476
        %510 = vmatprep.subr.mxu0 %v479
        %511 = vmatpush1.msra.mxu0 %v478
        %512 = vmatprep.subr.mxu0 %v481
        %513 = vmatpush1.msra.mxu0 %v480
        %514 = vmatprep.subr.mxu0 %v483
        %515 = vmatpush1.msra.mxu0 %v482
        %516 = vmatprep.subr.mxu0 %v485
        %517 = vmatpush1.msra.mxu0 %v484
        %518 = vmatprep.subr.mxu0 0.0
        %519 = vmatpush1.msra.mxu0 0.0
        %520 = vmatprep.subr.mxu0 0.0
        %521 = vmatpush1.msra.mxu0 0.0
        %522 = vmatprep.subr.mxu0 0.0
        %523 = vmatpush1.msra.mxu0 0.0
        %524 = vmatprep.subr.mxu0 0.0
        %525 = vmatpush1.msra.mxu0 0.0
        %526 = vmatprep.subr.mxu0 0.0
        %527 = vmatpush1.msra.mxu0 0.0
        %528 = vmatprep.subr.mxu0 0.0
        %529 = vmatpush1.msra.mxu0 0.0
        %530 = vmatprep.subr.mxu0 0.0
        %531 = vmatpush1.msra.mxu0 0.0
        %532 = vmatprep.subr.mxu0 0.0
        %533 = vmatpush1.msra.mxu0 0.0
        %534 = vmatprep.subr.mxu0 0.0
        %535 = vmatpush1.msra.mxu0 0.0
        %536 = vmatprep.subr.mxu0 0.0
        %537 = vmatpush1.msra.mxu0 0.0
        %538 = vmatprep.subr.mxu0 0.0
        %539 = vmatpush1.msra.mxu0 0.0
        %540 = vmatprep.subr.mxu0 0.0
        %541 = vmatpush1.msra.mxu0 0.0
        %542 = vmatprep.subr.mxu0 0.0
        %543 = vmatpush1.msra.mxu0 0.0
        %544 = vmatprep.subr.mxu0 0.0
        %545 = vmatpush1.msra.mxu0 0.0
        %546 = vmatprep.subr.mxu0 0.0
        %547 = vmatpush1.msra.mxu0 0.0
        %548 = vmatprep.subr.mxu0 0.0
        %549 = vmatpush1.msra.mxu0 0.0
        %550 = vmatprep.mubr.f32.mxu0 0.0
        %551 = vmatmul.mubr.f32.gmra.mrb[0].mxu0 %v453
        %v552 = vpop.f32.mrb[0].mxu0
        %v553 = vadd.f32 0.0, %v552
        %v554 = vpop.f32.mrb[0].mxu0
        %v555 = vadd.f32 0.0, %v554
        %556 = vdwg.mxu0
        %v557 = vxor.u32 %v553, 2147483648
        %v558 = vmul.f32 %v557, 1.442695
        %v559 = vpow.pop %v558
        %v560 = vadd.f32 %v559, 1.0
        %v561 = vrcp.pop %v560
        %v562 = vmul.f32 1.0, %v561
        %v563 = vsub.f32 1.0, %v562
        %v564 = vld [vmem:[%s374] sm:$0xff]
        %v565 = vmul.f32 %v563, %v564
        %v566 = vmul.f32 %v562, %v555
        %v567 = vadd.f32 %v565, %v566
        %568 = vst [vmem:[%s436] sm:$0xff] %v567
        %v569 = vadd.f32 %v437, %v567
        %v570 = vmul.f32 %v569, %v569
        %571 = vadd.xlane.f32.xlu0 %v570
        %v572 = vpop.xlane.xlu0 %571
        %v573 = vmul.f32 %v572, %v441
        %v574 = vadd.f32 %v573, 1e-06
        %v575 = vrsqrt.pop %v574
        %v576 = vmul.f32 %v569, %v575
        %v577 = vld [vmem:[#allocation10] sm:$0x1]
        %v579 = vlaneseq
        %v580 = vshrl.u32 %v579, 7
        %v581 = vsub.s32 0, %v580
        %v582 = vrot.slane %v577, %v581
        %v584 = vmul.f32 %v576, %v582
        %v585 = vld [vmem:[#allocation11] sm:$0xff]
        %v586 = vld [vmem:[#allocation11 + $0x8] sm:$0xff]
        %v587 = vld [vmem:[#allocation11 + $0x10] sm:$0xff]
        %v588 = vld [vmem:[#allocation11 + $0x18] sm:$0xff]
        %v589 = vld [vmem:[#allocation11 + $0x20] sm:$0xff]
        %v590 = vld [vmem:[#allocation11 + $0x28] sm:$0xff]
        %v591 = vld [vmem:[#allocation11 + $0x30] sm:$0xff]
        %v592 = vld [vmem:[#allocation11 + $0x38] sm:$0xff]
        %v593 = vld [vmem:[#allocation11 + $0x40] sm:$0xff]
        %v594 = vld [vmem:[#allocation11 + $0x48] sm:$0xff]
        %v595 = vld [vmem:[#allocation11 + $0x50] sm:$0xff]
        %v596 = vld [vmem:[#allocation11 + $0x58] sm:$0xff]
        %v597 = vld [vmem:[#allocation11 + $0x60] sm:$0xff]
        %v598 = vld [vmem:[#allocation11 + $0x68] sm:$0xff]
        %v599 = vld [vmem:[#allocation11 + $0x70] sm:$0xff]
        %v600 = vld [vmem:[#allocation11 + $0x78] sm:$0xff]
        %v601 = vld [vmem:[#allocation11 + $0x80] sm:$0xff]
        %v602 = vld [vmem:[#allocation11 + $0x88] sm:$0xff]
        %v603 = vld [vmem:[#allocation11 + $0x90] sm:$0xff]
        %v604 = vld [vmem:[#allocation11 + $0x98] sm:$0xff]
        %v605 = vld [vmem:[#allocation11 + $0xa0] sm:$0xff]
        %v606 = vld [vmem:[#allocation11 + $0xa8] sm:$0xff]
        %v607 = vld [vmem:[#allocation11 + $0xb0] sm:$0xff]
        %v608 = vld [vmem:[#allocation11 + $0xb8] sm:$0xff]
        %v609 = vld [vmem:[#allocation11 + $0xc0] sm:$0xff]
        %v610 = vld [vmem:[#allocation11 + $0xc8] sm:$0xff]
        %v611 = vld [vmem:[#allocation11 + $0xd0] sm:$0xff]
        %v612 = vld [vmem:[#allocation11 + $0xd8] sm:$0xff]
        %v613 = vld [vmem:[#allocation11 + $0xe0] sm:$0xff]
        %v614 = vld [vmem:[#allocation11 + $0xe8] sm:$0xff]
        %v615 = vld [vmem:[#allocation11 + $0xf0] sm:$0xff]
        %v616 = vld [vmem:[#allocation11 + $0xf8] sm:$0xff]
        %617 = vmatprep.subr.mxu0 %v586
        %618 = vmatpush1.msra.mxu0 %v585
        %619 = vmatprep.subr.mxu0 %v588
        %620 = vmatpush1.msra.mxu0 %v587
        %621 = vmatprep.subr.mxu0 %v590
        %622 = vmatpush1.msra.mxu0 %v589
        %623 = vmatprep.subr.mxu0 %v592
        %624 = vmatpush1.msra.mxu0 %v591
        %625 = vmatprep.subr.mxu0 %v594
        %626 = vmatpush1.msra.mxu0 %v593
        %627 = vmatprep.subr.mxu0 %v596
        %628 = vmatpush1.msra.mxu0 %v595
        %629 = vmatprep.subr.mxu0 %v598
        %630 = vmatpush1.msra.mxu0 %v597
        %631 = vmatprep.subr.mxu0 %v600
        %632 = vmatpush1.msra.mxu0 %v599
        %633 = vmatprep.subr.mxu0 %v602
        %634 = vmatpush1.msra.mxu0 %v601
        %635 = vmatprep.subr.mxu0 %v604
        %636 = vmatpush1.msra.mxu0 %v603
        %637 = vmatprep.subr.mxu0 %v606
        %638 = vmatpush1.msra.mxu0 %v605
        %639 = vmatprep.subr.mxu0 %v608
        %640 = vmatpush1.msra.mxu0 %v607
        %641 = vmatprep.subr.mxu0 %v610
        %642 = vmatpush1.msra.mxu0 %v609
        %643 = vmatprep.subr.mxu0 %v612
        %644 = vmatpush1.msra.mxu0 %v611
        %645 = vmatprep.subr.mxu0 %v614
        %646 = vmatpush1.msra.mxu0 %v613
        %647 = vmatprep.subr.mxu0 %v616
        %648 = vmatpush1.msra.mxu0 %v615
        %649 = vmatprep.subr.mxu0 0.0
        %650 = vmatpush1.msra.mxu0 0.0
        %651 = vmatprep.subr.mxu0 0.0
        %652 = vmatpush1.msra.mxu0 0.0
        %653 = vmatprep.subr.mxu0 0.0
        %654 = vmatpush1.msra.mxu0 0.0
        %655 = vmatprep.subr.mxu0 0.0
        %656 = vmatpush1.msra.mxu0 0.0
        %657 = vmatprep.subr.mxu0 0.0
        %658 = vmatpush1.msra.mxu0 0.0
        %659 = vmatprep.subr.mxu0 0.0
        %660 = vmatpush1.msra.mxu0 0.0
        %661 = vmatprep.subr.mxu0 0.0
        %662 = vmatpush1.msra.mxu0 0.0
        %663 = vmatprep.subr.mxu0 0.0
        %664 = vmatpush1.msra.mxu0 0.0
        %665 = vmatprep.subr.mxu0 0.0
        %666 = vmatpush1.msra.mxu0 0.0
        %667 = vmatprep.subr.mxu0 0.0
        %668 = vmatpush1.msra.mxu0 0.0
        %669 = vmatprep.subr.mxu0 0.0
        %670 = vmatpush1.msra.mxu0 0.0
        %671 = vmatprep.subr.mxu0 0.0
        %672 = vmatpush1.msra.mxu0 0.0
        %673 = vmatprep.subr.mxu0 0.0
        %674 = vmatpush1.msra.mxu0 0.0
        %675 = vmatprep.subr.mxu0 0.0
        %676 = vmatpush1.msra.mxu0 0.0
        %677 = vmatprep.subr.mxu0 0.0
        %678 = vmatpush1.msra.mxu0 0.0
        %679 = vmatprep.subr.mxu0 0.0
        %680 = vmatpush1.msra.mxu0 0.0
        %681 = vmatprep.mubr.f32.mxu0 0.0
        %682 = vmatmul.mubr.f32.gmra.mrb[0].mxu0 %v584
        %v683 = vpop.f32.mrb[0].mxu0
        %v684 = vadd.f32 0.0, %v683
        %v685 = vpop.f32.mrb[0].mxu0
        %v686 = vadd.f32 0.0, %v685
        %687 = vdwg.mxu0
        %v688 = vxor.u32 %v684, 2147483648
        %v689 = vmul.f32 %v688, 1.442695
        %v690 = vpow.pop %v689
        %v691 = vadd.f32 %v690, 1.0
        %v692 = vrcp.pop %v691
        %v693 = vmul.f32 1.0, %v692
        %v694 = vmul.f32 %v684, %v693
        %v695 = vmul.f32 %v694, %v686
        %v696 = vld [vmem:[#allocation13] sm:$0xff]
        %v697 = vld [vmem:[#allocation13 + $0x8] sm:$0xff]
        %v698 = vld [vmem:[#allocation13 + $0x10] sm:$0xff]
        %v699 = vld [vmem:[#allocation13 + $0x18] sm:$0xff]
        %v700 = vld [vmem:[#allocation13 + $0x20] sm:$0xff]
        %v701 = vld [vmem:[#allocation13 + $0x28] sm:$0xff]
        %v702 = vld [vmem:[#allocation13 + $0x30] sm:$0xff]
        %v703 = vld [vmem:[#allocation13 + $0x38] sm:$0xff]
        %v704 = vld [vmem:[#allocation13 + $0x40] sm:$0xff]
        %v705 = vld [vmem:[#allocation13 + $0x48] sm:$0xff]
        %v706 = vld [vmem:[#allocation13 + $0x50] sm:$0xff]
        %v707 = vld [vmem:[#allocation13 + $0x58] sm:$0xff]
        %v708 = vld [vmem:[#allocation13 + $0x60] sm:$0xff]
        %v709 = vld [vmem:[#allocation13 + $0x68] sm:$0xff]
        %v710 = vld [vmem:[#allocation13 + $0x70] sm:$0xff]
        %v711 = vld [vmem:[#allocation13 + $0x78] sm:$0xff]
        %712 = vmatprep.subr.mxu0 0.0
        %713 = vmatpush1.msra.mxu0 %v696
        %714 = vmatprep.subr.mxu0 0.0
        %715 = vmatpush1.msra.mxu0 %v697
        %716 = vmatprep.subr.mxu0 0.0
        %717 = vmatpush1.msra.mxu0 %v698
        %718 = vmatprep.subr.mxu0 0.0
        %719 = vmatpush1.msra.mxu0 %v699
        %720 = vmatprep.subr.mxu0 0.0
        %721 = vmatpush1.msra.mxu0 %v700
        %722 = vmatprep.subr.mxu0 0.0
        %723 = vmatpush1.msra.mxu0 %v701
        %724 = vmatprep.subr.mxu0 0.0
        %725 = vmatpush1.msra.mxu0 %v702
        %726 = vmatprep.subr.mxu0 0.0
        %727 = vmatpush1.msra.mxu0 %v703
        %728 = vmatprep.subr.mxu0 0.0
        %729 = vmatpush1.msra.mxu0 %v704
        %730 = vmatprep.subr.mxu0 0.0
        %731 = vmatpush1.msra.mxu0 %v705
        %732 = vmatprep.subr.mxu0 0.0
        %733 = vmatpush1.msra.mxu0 %v706
        %734 = vmatprep.subr.mxu0 0.0
        %735 = vmatpush1.msra.mxu0 %v707
        %736 = vmatprep.subr.mxu0 0.0
        %737 = vmatpush1.msra.mxu0 %v708
        %738 = vmatprep.subr.mxu0 0.0
        %739 = vmatpush1.msra.mxu0 %v709
        %740 = vmatprep.subr.mxu0 0.0
        %741 = vmatpush1.msra.mxu0 %v710
        %742 = vmatprep.subr.mxu0 0.0
        %743 = vmatpush1.msra.mxu0 %v711
        %744 = vmatprep.subr.mxu0 0.0
        %745 = vmatpush1.msra.mxu0 0.0
        %746 = vmatprep.subr.mxu0 0.0
        %747 = vmatpush1.msra.mxu0 0.0
        %748 = vmatprep.subr.mxu0 0.0
        %749 = vmatpush1.msra.mxu0 0.0
        %750 = vmatprep.subr.mxu0 0.0
        %751 = vmatpush1.msra.mxu0 0.0
        %752 = vmatprep.subr.mxu0 0.0
        %753 = vmatpush1.msra.mxu0 0.0
        %754 = vmatprep.subr.mxu0 0.0
        %755 = vmatpush1.msra.mxu0 0.0
        %756 = vmatprep.subr.mxu0 0.0
        %757 = vmatpush1.msra.mxu0 0.0
        %758 = vmatprep.subr.mxu0 0.0
        %759 = vmatpush1.msra.mxu0 0.0
        %760 = vmatprep.subr.mxu0 0.0
        %761 = vmatpush1.msra.mxu0 0.0
        %762 = vmatprep.subr.mxu0 0.0
        %763 = vmatpush1.msra.mxu0 0.0
        %764 = vmatprep.subr.mxu0 0.0
        %765 = vmatpush1.msra.mxu0 0.0
        %766 = vmatprep.subr.mxu0 0.0
        %767 = vmatpush1.msra.mxu0 0.0
        %768 = vmatprep.subr.mxu0 0.0
        %769 = vmatpush1.msra.mxu0 0.0
        %770 = vmatprep.subr.mxu0 0.0
        %771 = vmatpush1.msra.mxu0 0.0
        %772 = vmatprep.subr.mxu0 0.0
        %773 = vmatpush1.msra.mxu0 0.0
        %774 = vmatprep.subr.mxu0 0.0
        %775 = vmatpush1.msra.mxu0 0.0
        %776 = vmatprep.mubr.f32.mxu0 0.0
        %777 = vmatmul.mubr.f32.gmra.mrb[0].mxu0 %v695
        %v778 = vpop.f32.mrb[0].mxu0
        %v779 = vadd.f32 0.0, %v778
        %v780 = vpop.f32.mrb[0].mxu0
        %781 = vdwg.mxu0
        %v782 = vadd.f32 %v569, %v779
        %783 = vst [vmem:[%s429] sm:$0xff] %v782
        %s784 = sand.u32 %s199, 1
        %s785 = scalar_lea.sflag [#allocation4], %s784
        %s786 = sand.u32 %s199, 1
        %s787 = smul.addr %s786, 8
        %s788 = scalar_lea.vmem [#allocation14], %s787
        %s789 = sand.u32 %s225, 1
        %s790 = scalar_lea.sflag [#allocation16], %s789
        %s791 = sand.u32 %s225, 1
        %s792 = smul.addr %s791, 8
        %s793 = scalar_lea.vmem [#allocation15], %s792
        // Predicated region
        $region77: #{tpu_custom_call.1} parent=47 // pred_check
          %p794 = pneg %p209
        $region78: #{tpu_custom_call.1} parent=47 // pred_check_branch
          %796 = sbr.rel (%p794) target = $region80
        $region79: #{tpu_custom_call.1} parent=47 // pred_region
          %s798 = ssub.s32 128, 128
          %799 = vsyncadd %s785, %s798
          %s800 = smul.addr %s34, 128
          %s801 = scalar_lea.hbm %s7, %s800
          %s803 = sshll.u32 %s788, 4
          %s804 = int_to_ptr.vmem [resolvable:$true] %s803
          %806 = dma.vmem_to_hbm [thread:$0]  %s804, 128, %s801, %s785
        $region80: #{tpu_custom_call.1} parent=47 // pred_fallthru
          _
        // Predicated region
        $region81: #{tpu_custom_call.1} parent=47 // pred_check
          %p807 = pneg %p235
        $region82: #{tpu_custom_call.1} parent=47 // pred_check_branch
          %809 = sbr.rel (%p807) target = $region84
        $region83: #{tpu_custom_call.1} parent=47 // pred_region
          %s811 = ssub.s32 128, 128
          %812 = vsyncadd %s790, %s811
          %s813 = smul.addr %s34, 128
          %s814 = scalar_lea.hbm %s8, %s813
          %s816 = sshll.u32 %s793, 4
          %s817 = int_to_ptr.vmem [resolvable:$true] %s816
          %819 = dma.vmem_to_hbm [thread:$0]  %s817, 128, %s814, %s790
        $region84: #{tpu_custom_call.1} parent=47 // pred_fallthru
          _
      $region48: #{tpu_custom_call.1} parent=5 // pred_fallthru
        _
      %p820 = scmp.le.s32.totalorder 2, %s29
      // Predicated region
      $region85: #{tpu_custom_call.1} parent=5 // pred_check
        %p821 = pneg %p820
      $region86: #{tpu_custom_call.1} parent=5 // pred_check_branch
        %823 = sbr.rel (%p821) target = $region88
      $region87: #{tpu_custom_call.1} parent=5 // pred_region
        %s824 = ssub.s32 %s29, 2
        // Predicated region
        $region89: #{tpu_custom_call.1} parent=87 // pred_check
          %p825 = pneg %p215
        $region90: #{tpu_custom_call.1} parent=87 // pred_check_branch
          %827 = sbr.rel (%p825) target = $region92
        $region91: #{tpu_custom_call.1} parent=87 // pred_region
          %s828 = sand.u32 %s200, 1
          %s829 = scalar_lea.sflag [#allocation4], %s828
          %s830 = sand.u32 %s200, 1
          %s831 = smul.addr %s830, 8
          %s832 = scalar_lea.vmem [#allocation14], %s831
          %833 = dma.done %s829, 128
        $region92: #{tpu_custom_call.1} parent=87 // pred_fallthru
          _
        // Predicated region
        $region93: #{tpu_custom_call.1} parent=87 // pred_check
          %p834 = pneg %p241
        $region94: #{tpu_custom_call.1} parent=87 // pred_check_branch
          %836 = sbr.rel (%p834) target = $region96
        $region95: #{tpu_custom_call.1} parent=87 // pred_region
          %s837 = sand.u32 %s226, 1
          %s838 = scalar_lea.sflag [#allocation16], %s837
          %s839 = sand.u32 %s226, 1
          %s840 = smul.addr %s839, 8
          %s841 = scalar_lea.vmem [#allocation15], %s840
          %842 = dma.done %s838, 128
        $region96: #{tpu_custom_call.1} parent=87 // pred_fallthru
          _
      $region88: #{tpu_custom_call.1} parent=5 // pred_fallthru
        _
    $region6: #{tpu_custom_call.1} parent=1 // loop_footer
      %s33 = sadd.s32 1, %s29
    $region7: #{tpu_custom_call.1} parent=1 // loop_footer_branch
      %28 = sbr.rel target = $region3
    $region8: #{tpu_custom_call.1} parent=1 // loop_exit
      _
    %843 = vsyncpa [#allocation3], 1
    %s844 = scalar_lea.sflag [#allocation3], 1
    %845 = vsyncpa %s844, 1
    %846 = vsyncpa [#allocation6], 1
    %s847 = scalar_lea.sflag [#allocation6], 1
    %848 = vsyncpa %s847, 1
    %849 = vsyncpa [#allocation9], 1
    %850 = vsyncpa [#allocation12], 1
    %851 = vsyncpa [#allocation4], 1
    %s852 = scalar_lea.sflag [#allocation4], 1
    %853 = vsyncpa %s852, 1
    %854 = vsyncpa [#allocation16], 1
    %s855 = scalar_lea.sflag [#allocation16], 1
    %856 = vsyncpa %s855, 1

</llo_original>
